<compile_context>
chip_gen: v5e
topology: v5e:2x2
jax: 0.10.0
libtpu: 0.0.40
codegen_flags: <defaults>
</compile_context>

<pallas_src>
import functools

import jax
import jax.numpy as jnp
from jax.experimental import pallas as pl
from jax.experimental.pallas import tpu as pltpu


def _pad1d_kernel(x_ref, o_ref, *, pad: int):
    # x_ref : (TILE_C, N)          in VMEM
    # o_ref : (TILE_C, N + 2*pad)  in VMEM, float32
    n = x_ref.shape[1]
    # Bulk middle copy: single wide store (the mem-bound hot path).
    o_ref[:, pad:pad + n] = x_ref[...].astype(jnp.float32)
    if pad > 0:  # `pad` is static; edge stores vanish at trace time if 0
        # Left edge <- wrap-around tail of x.
        o_ref[:, :pad] = x_ref[:, n - pad:].astype(jnp.float32)
        # Right edge <- wrap-around head of x.
        o_ref[:, pad + n:] = x_ref[:, :pad].astype(jnp.float32)


def _choose_tile_c(c: int, n: int, pad: int, itemsize: int) -> int:
    """Largest multiple-of-8 divisor of C (capped) whose double-buffered
    input+output tiles fit comfortably under the most constrained scoped-VMEM
    budget (v5e: 16 MiB default)."""
    budget = 8 * 1024 * 1024   # bytes; leave headroom under v5e's 16 MiB scope
    max_tile = 1024            # keep several grid steps for pipelining on big C
    best = None
    t = 8
    while t <= min(c, max_tile):
        if c % t == 0:
            # 2x (double buffer) * (input tile + f32 output tile)
            tile_bytes = 2 * t * (n * itemsize + (n + 2 * pad) * 4)
            if tile_bytes <= budget:
                best = t
        t += 8
    # Small / irregular C: a full-extent block is always legal.
    return best if best is not None else c


def pad1d(x: jax.Array, pad: int, *, tile_c: int | None = None) -> jax.Array:
    """Circular 1-D pad of x[1, C, N] -> [1, C, N + 2*pad] (float32)."""
    assert x.ndim == 3 and x.shape[0] == 1, "module assumes batch dim == 1"
    c, n = x.shape[1], x.shape[2]
    assert 0 <= pad <= n, "pad must not exceed sequence length"
    if pad == 0:
        # Pure dtype cast; avoid zero-width slices in the kernel.
        return x.astype(jnp.float32)

    if tile_c is None:
        tile_c = _choose_tile_c(c, n, pad, x.dtype.itemsize)
    assert c % tile_c == 0, "tile_c must divide C"

    out2d = pl.pallas_call(
        functools.partial(_pad1d_kernel, pad=pad),
        out_shape=jax.ShapeDtypeStruct((c, n + 2 * pad), jnp.float32),
        grid=(c // tile_c,),
        in_specs=[pl.BlockSpec((tile_c, n), lambda i: (i, 0))],
        out_specs=pl.BlockSpec((tile_c, n + 2 * pad), lambda i: (i, 0)),
        compiler_params=pltpu.CompilerParams(
            dimension_semantics=("parallel",)),
    )(x[0])
    return out2d[None]


def _pad1d_ref(x: jax.Array, pad: int) -> jax.Array:
    xs = x.astype(jnp.float32)[0]
    if pad == 0:
        return xs[None]
    ref = jnp.concatenate([xs[:, -pad:], xs, xs[:, :pad]], axis=-1)
    return ref[None]


if __name__ == "__main__":
    key = jax.random.PRNGKey(0)

    # Small shapes consistent with the module's [1, C, n] convention.
    C, N, PAD = 4, 16, 3
    x = jax.random.normal(key, (1, C, N), dtype=jnp.float32)
    out = jax.block_until_ready(pad1d(x, PAD))
    expected = _pad1d_ref(x, PAD)
    assert out.shape == (1, C, N + 2 * PAD), out.shape
    assert out.dtype == jnp.float32
    assert jnp.allclose(out, expected), "mismatch vs reference circular pad"

    # Exercise the multi-tile grid path (grid=(2,)) and a sub-32-bit input.
    C2, N2, PAD2 = 16, 32, 4
    x2 = jax.random.normal(jax.random.PRNGKey(0), (1, C2, N2)).astype(jnp.bfloat16)
    out2 = jax.block_until_ready(pad1d(x2, PAD2, tile_c=8))
    exp2 = _pad1d_ref(x2, PAD2)
    assert out2.shape == (1, C2, N2 + 2 * PAD2), out2.shape
    assert out2.dtype == jnp.float32
    assert jnp.allclose(out2, exp2), "mismatch vs reference circular pad (tiled)"

    print("KERNEL_OK")
</pallas_src>

<mosaic_0001>
module attributes {stable_mosaic.version = 11 : i64} {
  func.func @_pad1d_kernel(%arg0: i32, %arg1: memref<4x16xf32, #tpu.memory_space<vmem>>, %arg2: memref<4x22xf32, #tpu.memory_space<vmem>>) attributes {dimension_semantics = [#tpu.dimension_semantics<parallel>], iteration_bounds = array<i64: 1>, scalar_prefetch = 0 : i64, scratch_operands = 0 : i64, tpu.core_type = #tpu.core_type<tc>, window_params = [{transform_indices = @transform_0, window_bounds = array<i64: 4, 16>}, {transform_indices = @transform_1, window_bounds = array<i64: 4, 22>}]} {
    %c0 = arith.constant 0 : index
    %c0_0 = arith.constant 0 : index
    %0 = vector.load %arg1[%c0, %c0_0] : memref<4x16xf32, #tpu.memory_space<vmem>>, vector<4x16xf32>
    %c0_1 = arith.constant 0 : index
    %c3 = arith.constant 3 : index
    %1 = vector.load %arg2[%c0_1, %c3] : memref<4x22xf32, #tpu.memory_space<vmem>>, vector<4x16xf32>
    tpu.vector_store %arg2[%c0_1, %c3], %0 {strides = array<i32>} : memref<4x22xf32, #tpu.memory_space<vmem>>, vector<4x16xf32>,
    %c0_2 = arith.constant 0 : index
    %c13 = arith.constant 13 : index
    %2 = vector.load %arg1[%c0_2, %c13] : memref<4x16xf32, #tpu.memory_space<vmem>>, vector<4x3xf32>
    %c0_3 = arith.constant 0 : index
    %c0_4 = arith.constant 0 : index
    %3 = vector.load %arg2[%c0_3, %c0_4] : memref<4x22xf32, #tpu.memory_space<vmem>>, vector<4x3xf32>
    tpu.vector_store %arg2[%c0_3, %c0_4], %2 {strides = array<i32>} : memref<4x22xf32, #tpu.memory_space<vmem>>, vector<4x3xf32>,
    %c0_5 = arith.constant 0 : index
    %c0_6 = arith.constant 0 : index
    %4 = vector.load %arg1[%c0_5, %c0_6] : memref<4x16xf32, #tpu.memory_space<vmem>>, vector<4x3xf32>
    %c0_7 = arith.constant 0 : index
    %c19 = arith.constant 19 : index
    %5 = vector.load %arg2[%c0_7, %c19] : memref<4x22xf32, #tpu.memory_space<vmem>>, vector<4x3xf32>
    tpu.vector_store %arg2[%c0_7, %c19], %4 {strides = array<i32>} : memref<4x22xf32, #tpu.memory_space<vmem>>, vector<4x3xf32>,
    return
  }
  func.func @transform_0(%arg0: i32) -> (i32, i32) {
    %c0_i32 = arith.constant 0 : i32
    %c0_i32_0 = arith.constant 0 : i32
    return %arg0, %c0_i32 : i32, i32
  }
  func.func @transform_1(%arg0: i32) -> (i32, i32) {
    %c0_i32 = arith.constant 0 : i32
    %c0_i32_0 = arith.constant 0 : i32
    return %arg0, %c0_i32 : i32, i32
  }
}

</mosaic_0001>

<llo_original>
// kernel: tpu_custom_call.1
$region0: #{tpu_custom_call.1}
  #allocation0 [shape = 'u32[]', space=smem, size = 0x4, offset = 0x4, fixed_abs, tag = 'smem constant byte address 0x4 - core index']
  #allocation1 [shape = 'u32[72,128]{1,0:T(1,128)}', space=vmem, size = 0x9000, scoped, tag = 'internal scratch']
  %s0 = inlined_call_operand.hbm [shape: f32[4,16], index: 0, kind: input, shape index: {}]
  %s1 = inlined_call_operand.hbm [shape: f32[4,22], index: 1, kind: output, shape index: {}]
  %s2 = sld [smem:[#allocation0]]
  $region18: #{tpu_custom_call.1} parent=0
    _
  %s4 = ssub.s32 1, %s2
  %s5 = scalar_select 0, %s4, %s2
  $region1: #{tpu_custom_call.1} parent=0
    #allocation2 [shape = 'u8[2048]{0}', space=vmem, size = 0x800, scoped, tag = 'input window, operand 0, single buffered']
    #allocation3 [shape = 's32[1]{0}', space=sflag, size = 0x4, scoped, tag = 'scoped memory for tpu_custom_call.1']
    #allocation4 [shape = 's32[1]{0}', space=sflag, size = 0x4, scoped, tag = 'scoped memory for tpu_custom_call.1']
    #allocation5 [shape = 'u8[2048]{0}', space=vmem, size = 0x800, scoped, tag = 'output window, operand 0, single buffered']
    %6 = vsyncpa [#allocation3], 0
    %7 = vsyncpa [#allocation4], 0
    // Predicated region
    $region2: #{tpu_custom_call.1} parent=1 // pred_check
      _
    $region3: #{tpu_custom_call.1} parent=1 // pred_check_branch
      %9 = sbr.rel (0) target = $region5
    $region4: #{tpu_custom_call.1} parent=1 // pred_region
      %11 = vsyncadd [#allocation3], 0
      %s13 = sshll.u32 %s0, 4
      %s14 = int_to_ptr.hbm [resolvable:$true] %s13
      %s15 = sshll.u32 [#allocation2], 4
      %s16 = int_to_ptr.vmem [resolvable:$true] %s15
      %18 = dma.hbm_to_vmem [thread:$0]  %s14, 64, %s16, [#allocation3]
    $region5: #{tpu_custom_call.1} parent=1 // pred_fallthru
      _
    // Predicated region
    $region6: #{tpu_custom_call.1} parent=1 // pred_check
      _
    $region7: #{tpu_custom_call.1} parent=1 // pred_check_branch
      %20 = sbr.rel (0) target = $region9
    $region8: #{tpu_custom_call.1} parent=1 // pred_region
      %22 = dma.done [#allocation3], 64
    $region9: #{tpu_custom_call.1} parent=1 // pred_fallthru
      _
    %v23 = vld [vmem:[#allocation2] sm:$0xf]
    %25 = vrot.lane.b32.xlu0 %v23, 3
    %v26 = vpop.permute.xlu0 %25
    %vm28 = vcmask 150552
    %29 = vst.msk [vmem:[#allocation5] sm:$0xf] %vm28, %v26
    %v30 = vld [vmem:[#allocation2] sm:$0xf]
    %32 = vrot.lane.b32.xlu0 %v30, 115
    %v33 = vpop.permute.xlu0 %32
    %vm35 = vcmask 19456
    %36 = vst.msk [vmem:[#allocation5] sm:$0xf] %vm35, %v33
    %v37 = vld [vmem:[#allocation2] sm:$0xf]
    %39 = vrot.lane.b32.xlu0 %v37, 19
    %v40 = vpop.permute.xlu0 %39
    %vm42 = vcmask 175256
    %43 = vst.msk [vmem:[#allocation5] sm:$0xf] %vm42, %v40
    // Predicated region
    $region10: #{tpu_custom_call.1} parent=1 // pred_check
      _
    $region11: #{tpu_custom_call.1} parent=1 // pred_check_branch
      %45 = sbr.rel (0) target = $region13
    $region12: #{tpu_custom_call.1} parent=1 // pred_region
      %47 = vsyncadd [#allocation4], 0
      %s49 = sshll.u32 [#allocation5], 4
      %s50 = int_to_ptr.vmem [resolvable:$true] %s49
      %s51 = sshll.u32 %s1, 4
      %s52 = int_to_ptr.hbm [resolvable:$true] %s51
      %54 = dma.vmem_to_hbm [thread:$0]  %s50, 64, %s52, [#allocation4]
    $region13: #{tpu_custom_call.1} parent=1 // pred_fallthru
      _
    // Predicated region
    $region14: #{tpu_custom_call.1} parent=1 // pred_check
      _
    $region15: #{tpu_custom_call.1} parent=1 // pred_check_branch
      %56 = sbr.rel (0) target = $region17
    $region16: #{tpu_custom_call.1} parent=1 // pred_region
      %58 = dma.done [#allocation4], 64
    $region17: #{tpu_custom_call.1} parent=1 // pred_fallthru
      _
    %59 = vsyncpa [#allocation3], 1
    %60 = vsyncpa [#allocation4], 1

</llo_original>
